<compile_context>
chip_gen: v5e
topology: v5e:2x2
jax: 0.10.0
libtpu: 0.0.40
codegen_flags: <defaults>
</compile_context>

<pallas_src>
import jax
import jax.numpy as jnp
from jax import lax
from jax.experimental import pallas as pl
from jax.experimental.pallas import tpu as pltpu


def _simple_rnn_kernel(g_ref, h_ref, wg_ref, wh_ref, p_ref, o_ref):
    # 1x1 convs as channel matmuls on the (channels, spatial) tile -> MXU.
    # (Two dots kept for clarity; the K=nf dot is tiny but the kernel is mem-bound.)
    s = jnp.dot(wh_ref[...], h_ref[...], preferred_element_type=jnp.float32)
    s = s + jnp.dot(wg_ref[...], g_ref[...], preferred_element_type=jnp.float32)
    s = s + p_ref[:, 0:1]  # combined conv bias (nh, 1), broadcasts over lanes

    # LeakyReLU (negative_slope = 0.01, PyTorch default)
    a = jnp.where(s > 0, s, jnp.float32(0.01) * s)

    # LayerNorm over the nh channels (sublane axis), eps = 1e-5
    mean = jnp.mean(a, axis=0, keepdims=True)          # (1, T)
    centered = a - mean
    var = jnp.mean(centered * centered, axis=0, keepdims=True)
    norm = centered * lax.rsqrt(var + jnp.float32(1e-5))

    # affine: gamma = p[:,1:2], beta = p[:,2:3], both (nh, 1) broadcast over lanes
    o_ref[...] = (norm * p_ref[:, 1:2] + p_ref[:, 2:3]).astype(o_ref.dtype)


def _pick_spatial_tile(hw, cap=8192):
    """Largest multiple of 128 that divides hw and is <= cap; else the full extent."""
    best = None
    t = 128
    while t <= min(hw, cap):
        if hw % t == 0:
            best = t
        t += 128
    return best if best is not None else hw


def simple_rnn_forward(g, h, params, *, max_tile=8192):
    """g: (B, nf, H, W), h: (B, nh, H, W)  (NCHW, like PyTorch).  Returns (B, nh, H, W)."""
    B, nf, H, W = g.shape
    nh = h.shape[1]
    HW = H * W

    # Free reshapes only (no data movement, no HBM transpose passes, no padding).
    g3 = g.reshape(B, nf, HW)
    h3 = h.reshape(B, nh, HW)

    # conv weights (out, in, 1, 1) -> (out, in) so W @ X(channels, spatial) gives (nh, T)
    wg = params["wg"].reshape(nh, nf).astype(jnp.float32)
    wh = params["wh"].reshape(nh, nh).astype(jnp.float32)
    bias = (params["bg"] + params["bh"]).reshape(nh, 1)
    gamma = params["gamma"].reshape(nh, 1)
    beta = params["beta"].reshape(nh, 1)
    p = jnp.concatenate([bias, gamma, beta], axis=1).astype(jnp.float32)  # (nh, 3)

    T = _pick_spatial_tile(HW, max_tile)
    grid = (B, HW // T)

    out3 = pl.pallas_call(
        _simple_rnn_kernel,
        out_shape=jax.ShapeDtypeStruct((B, nh, HW), jnp.float32),
        grid_spec=pltpu.PrefetchScalarGridSpec(
            num_scalar_prefetch=0,
            grid=grid,
            in_specs=[
                pl.BlockSpec((None, nf, T), lambda b, i: (b, 0, i)),   # g tile (nf, T)
                pl.BlockSpec((None, nh, T), lambda b, i: (b, 0, i)),   # h tile (nh, T)
                pl.BlockSpec((nh, nf), lambda b, i: (0, 0)),           # W_g (resident)
                pl.BlockSpec((nh, nh), lambda b, i: (0, 0)),           # W_h (resident)
                pl.BlockSpec((nh, 3), lambda b, i: (0, 0)),            # [bias, gamma, beta]
            ],
            out_specs=pl.BlockSpec((None, nh, T), lambda b, i: (b, 0, i)),
        ),
        compiler_params=pltpu.CompilerParams(
            dimension_semantics=("parallel", "parallel")),
    )(g3, h3, wg, wh, p)

    # (B, nh, HW) -> (B, nh, H, W): free reshape, output already NCHW.
    return out3.reshape(B, nh, H, W)


def _reference_forward(g, h, params):
    """Pure-JAX reference of the PyTorch forward (W > 1 branch)."""
    B, nf, H, W = g.shape
    nh = h.shape[1]
    wg = params["wg"].reshape(nh, nf)
    wh = params["wh"].reshape(nh, nh)
    gc = jnp.einsum("oc,bchw->bohw", wg, g) + params["bg"][None, :, None, None]
    hc = jnp.einsum("oc,bchw->bohw", wh, h) + params["bh"][None, :, None, None]
    s = gc + hc
    a = jnp.where(s > 0, s, 0.01 * s)
    mean = jnp.mean(a, axis=1, keepdims=True)
    var = jnp.mean((a - mean) ** 2, axis=1, keepdims=True)
    norm = (a - mean) / jnp.sqrt(var + 1e-5)
    return norm * params["gamma"][None, :, None, None] + params["beta"][None, :, None, None]


def init_params(key, nf, nh):
    k1, k2, k3, k4 = jax.random.split(key, 4)
    return {
        "wg": jax.random.normal(k1, (nh, nf, 1, 1), jnp.float32) * 0.2,   # Conv2d(nf, nh, 1)
        "bg": jax.random.normal(k2, (nh,), jnp.float32) * 0.1,
        "wh": jax.random.normal(k3, (nh, nh, 1, 1), jnp.float32) * 0.2,   # Conv2d(nh, nh, 1)
        "bh": jax.random.normal(k4, (nh,), jnp.float32) * 0.1,
        "gamma": jnp.ones((nh, 1, 1), jnp.float32),                        # LayerNorm((nh,1,1))
        "beta": jnp.zeros((nh, 1, 1), jnp.float32),
    }


if __name__ == "__main__":
    B, nf, nh, H, W = 2, 4, 32, 16, 16
    key = jax.random.PRNGKey(0)
    kg, kh, kp = jax.random.split(key, 3)

    g = jax.random.normal(kg, (B, nf, H, W), jnp.float32)
    h = jax.random.normal(kh, (B, nh, H, W), jnp.float32)
    params = init_params(kp, nf, nh)

    out = simple_rnn_forward(g, h, params)
    out = jax.block_until_ready(out)

    ref = _reference_forward(g, h, params)
    assert out.shape == (B, nh, H, W)
    assert jnp.allclose(out, ref, atol=1e-4, rtol=1e-4), "mismatch vs reference"

    print("KERNEL_OK")
</pallas_src>

<mosaic_0001>
module attributes {stable_mosaic.version = 11 : i64} {
  func.func @_simple_rnn_kernel(%arg0: i32, %arg1: i32, %arg2: memref<1x4x256xf32, #tpu.memory_space<vmem>>, %arg3: memref<1x32x256xf32, #tpu.memory_space<vmem>>, %arg4: memref<32x4xf32, #tpu.memory_space<vmem>>, %arg5: memref<32x32xf32, #tpu.memory_space<vmem>>, %arg6: memref<32x3xf32, #tpu.memory_space<vmem>>, %arg7: memref<1x32x256xf32, #tpu.memory_space<vmem>>) attributes {dimension_semantics = [#tpu.dimension_semantics<parallel>, #tpu.dimension_semantics<parallel>], iteration_bounds = array<i64: 2, 1>, scalar_prefetch = 0 : i64, scratch_operands = 0 : i64, tpu.core_type = #tpu.core_type<tc>, window_params = [{transform_indices = @transform_0, window_bounds = array<i64: 1, 4, 256>}, {transform_indices = @transform_1, window_bounds = array<i64: 1, 32, 256>}, {pipeline_mode = #tpu.pipeline_mode<synchronous>, transform_indices = @transform_2, window_bounds = array<i64: 32, 4>}, {pipeline_mode = #tpu.pipeline_mode<synchronous>, transform_indices = @transform_3, window_bounds = array<i64: 32, 32>}, {pipeline_mode = #tpu.pipeline_mode<synchronous>, transform_indices = @transform_4, window_bounds = array<i64: 32, 3>}, {transform_indices = @transform_5, window_bounds = array<i64: 1, 32, 256>}]} {
    %c0 = arith.constant 0 : index
    %c0_0 = arith.constant 0 : index
    %0 = vector.load %arg5[%c0, %c0_0] : memref<32x32xf32, #tpu.memory_space<vmem>>, vector<32x32xf32>
    %c0_1 = arith.constant 0 : index
    %c0_2 = arith.constant 0 : index
    %c0_3 = arith.constant 0 : index
    %1 = vector.load %arg3[%c0_1, %c0_2, %c0_3] : memref<1x32x256xf32, #tpu.memory_space<vmem>>, vector<1x32x256xf32>
    %2 = vector.shape_cast %1 : vector<1x32x256xf32> to vector<32x256xf32>
    %cst = arith.constant dense<0.000000e+00> : vector<32x256xf32>
    %3 = tpu.matmul %0, %2, %cst {dimension_numbers = #tpu.dot_dimension_numbers<[1], [0], [0], [1], [0, 0, 1, 1], [], []>} : vector<32x32xf32>, vector<32x256xf32>, vector<32x256xf32> -> vector<32x256xf32>
    %c0_4 = arith.constant 0 : index
    %c0_5 = arith.constant 0 : index
    %4 = vector.load %arg4[%c0_4, %c0_5] : memref<32x4xf32, #tpu.memory_space<vmem>>, vector<32x4xf32>
    %c0_6 = arith.constant 0 : index
    %c0_7 = arith.constant 0 : index
    %c0_8 = arith.constant 0 : index
    %5 = vector.load %arg2[%c0_6, %c0_7, %c0_8] : memref<1x4x256xf32, #tpu.memory_space<vmem>>, vector<1x4x256xf32>
    %6 = vector.shape_cast %5 : vector<1x4x256xf32> to vector<4x256xf32>
    %cst_9 = arith.constant dense<0.000000e+00> : vector<32x256xf32>
    %7 = tpu.matmul %4, %6, %cst_9 {dimension_numbers = #tpu.dot_dimension_numbers<[1], [0], [0], [1], [0, 0, 1, 1], [], []>} : vector<32x4xf32>, vector<4x256xf32>, vector<32x256xf32> -> vector<32x256xf32>
    %8 = arith.addf %3, %7 : vector<32x256xf32>
    %c0_10 = arith.constant 0 : index
    %c0_11 = arith.constant 0 : index
    %9 = vector.load %arg6[%c0_10, %c0_11] : memref<32x3xf32, #tpu.memory_space<vmem>>, vector<32x1xf32>
    %10 = vector.broadcast %9 : vector<32x1xf32> to vector<32x256xf32>
    %11 = arith.addf %8, %10 : vector<32x256xf32>
    %cst_12 = arith.constant 0.000000e+00 : f32
    %12 = vector.broadcast %cst_12 : f32 to vector<32x256xf32>
    %13 = arith.cmpf ogt, %11, %12 : vector<32x256xf32>
    %cst_13 = arith.constant 0.00999999977 : f32
    %14 = vector.broadcast %cst_13 : f32 to vector<32x256xf32>
    %15 = arith.mulf %14, %11 : vector<32x256xf32>
    %16 = arith.select %13, %11, %15 : vector<32x256xi1>, vector<32x256xf32>
    %cst_14 = arith.constant dense<0.000000e+00> : vector<256xf32>
    %17 = vector.multi_reduction <add>, %16, %cst_14 [0] : vector<32x256xf32> to vector<256xf32>
    %18 = vector.shape_cast %17 : vector<256xf32> to vector<1x256xf32>
    %cst_15 = arith.constant 3.200000e+01 : f32
    %19 = vector.broadcast %cst_15 : f32 to vector<1x256xf32>
    %20 = arith.divf %18, %19 : vector<1x256xf32>
    %21 = vector.broadcast %20 : vector<1x256xf32> to vector<32x256xf32>
    %22 = arith.subf %16, %21 : vector<32x256xf32>
    %23 = arith.mulf %22, %22 : vector<32x256xf32>
    %cst_16 = arith.constant dense<0.000000e+00> : vector<256xf32>
    %24 = vector.multi_reduction <add>, %23, %cst_16 [0] : vector<32x256xf32> to vector<256xf32>
    %25 = vector.shape_cast %24 : vector<256xf32> to vector<1x256xf32>
    %cst_17 = arith.constant 3.200000e+01 : f32
    %26 = vector.broadcast %cst_17 : f32 to vector<1x256xf32>
    %27 = arith.divf %25, %26 : vector<1x256xf32>
    %cst_18 = arith.constant 9.99999974E-6 : f32
    %28 = vector.broadcast %cst_18 : f32 to vector<1x256xf32>
    %29 = arith.addf %27, %28 : vector<1x256xf32>
    %30 = math.rsqrt %29 : vector<1x256xf32>
    %31 = vector.broadcast %30 : vector<1x256xf32> to vector<32x256xf32>
    %32 = arith.mulf %22, %31 : vector<32x256xf32>
    %c0_19 = arith.constant 0 : index
    %c1 = arith.constant 1 : index
    %33 = vector.load %arg6[%c0_19, %c1] : memref<32x3xf32, #tpu.memory_space<vmem>>, vector<32x1xf32>
    %34 = vector.broadcast %33 : vector<32x1xf32> to vector<32x256xf32>
    %35 = arith.mulf %32, %34 : vector<32x256xf32>
    %c0_20 = arith.constant 0 : index
    %c2 = arith.constant 2 : index
    %36 = vector.load %arg6[%c0_20, %c2] : memref<32x3xf32, #tpu.memory_space<vmem>>, vector<32x1xf32>
    %37 = vector.broadcast %36 : vector<32x1xf32> to vector<32x256xf32>
    %38 = arith.addf %35, %37 : vector<32x256xf32>
    %c0_21 = arith.constant 0 : index
    %c0_22 = arith.constant 0 : index
    %c0_23 = arith.constant 0 : index
    %39 = vector.load %arg7[%c0_21, %c0_22, %c0_23] : memref<1x32x256xf32, #tpu.memory_space<vmem>>, vector<1x32x256xf32>
    %40 = vector.shape_cast %39 : vector<1x32x256xf32> to vector<32x256xf32>
    %41 = vector.shape_cast %38 : vector<32x256xf32> to vector<1x32x256xf32>
    tpu.vector_store %arg7[%c0_21, %c0_22, %c0_23], %41 {strides = array<i32>} : memref<1x32x256xf32, #tpu.memory_space<vmem>>, vector<1x32x256xf32>,
    return
  }
  func.func @transform_0(%arg0: i32, %arg1: i32) -> (i32, i32, i32) {
    %c0_i32 = arith.constant 0 : i32
    %c0_i32_0 = arith.constant 0 : i32
    return %arg0, %c0_i32, %arg1 : i32, i32, i32
  }
  func.func @transform_1(%arg0: i32, %arg1: i32) -> (i32, i32, i32) {
    %c0_i32 = arith.constant 0 : i32
    %c0_i32_0 = arith.constant 0 : i32
    return %arg0, %c0_i32, %arg1 : i32, i32, i32
  }
  func.func @transform_2(%arg0: i32, %arg1: i32) -> (i32, i32) {
    %c0_i32 = arith.constant 0 : i32
    %c0_i32_0 = arith.constant 0 : i32
    %c0_i32_1 = arith.constant 0 : i32
    return %c0_i32, %c0_i32_0 : i32, i32
  }
  func.func @transform_3(%arg0: i32, %arg1: i32) -> (i32, i32) {
    %c0_i32 = arith.constant 0 : i32
    %c0_i32_0 = arith.constant 0 : i32
    %c0_i32_1 = arith.constant 0 : i32
    return %c0_i32, %c0_i32_0 : i32, i32
  }
  func.func @transform_4(%arg0: i32, %arg1: i32) -> (i32, i32) {
    %c0_i32 = arith.constant 0 : i32
    %c0_i32_0 = arith.constant 0 : i32
    %c0_i32_1 = arith.constant 0 : i32
    return %c0_i32, %c0_i32_0 : i32, i32
  }
  func.func @transform_5(%arg0: i32, %arg1: i32) -> (i32, i32, i32) {
    %c0_i32 = arith.constant 0 : i32
    %c0_i32_0 = arith.constant 0 : i32
    return %arg0, %c0_i32, %arg1 : i32, i32, i32
  }
}

</mosaic_0001>

<llo_original>
// kernel: tpu_custom_call.1
$region0: #{tpu_custom_call.1}
  #allocation0 [shape = 'u32[]', space=smem, size = 0x4, offset = 0x4, fixed_abs, tag = 'smem constant byte address 0x4 - core index']
  #allocation1 [shape = 'u32[72,128]{1,0:T(1,128)}', space=vmem, size = 0x9000, scoped, tag = 'internal scratch']
  %s0 = inlined_call_operand.vmem [shape: f32[2,4,256], index: 0, kind: input, shape index: {}]
  %s1 = inlined_call_operand.hbm [shape: f32[2,32,256], index: 1, kind: input, shape index: {}]
  %s2 = inlined_call_operand.vmem [shape: f32[32,4], index: 2, kind: input, shape index: {}]
  %s3 = inlined_call_operand.vmem [shape: f32[32,32], index: 3, kind: input, shape index: {}]
  %s4 = inlined_call_operand.vmem [shape: f32[32,3], index: 4, kind: input, shape index: {}]
  %s5 = inlined_call_operand.hbm [shape: f32[2,32,256], index: 5, kind: output, shape index: {}]
  %s6 = sld [smem:[#allocation0]]
  $region57: #{tpu_custom_call.1} parent=0
    _
  %s8 = ssub.s32 1, %s6
  %s9 = scalar_select 0, %s8, %s6
  $region1: #{tpu_custom_call.1} parent=0
    #allocation2 [shape = 'u8[65536]{0}', space=vmem, size = 0x10000, scoped, tag = 'input window, operand 1']
    #allocation3 [shape = 's32[2]{0}', space=sflag, size = 0x8, scoped, tag = 'scoped memory for tpu_custom_call.1']
    #allocation4 [shape = 's32[2]{0}', space=sflag, size = 0x8, scoped, tag = 'scoped memory for tpu_custom_call.1']
    #allocation5 [shape = 'u8[65536]{0}', space=vmem, size = 0x10000, scoped, tag = 'output window, operand 0']
    %10 = vsyncpa [#allocation3], 0
    %s11 = scalar_lea.sflag [#allocation3], 1
    %12 = vsyncpa %s11, 0
    %13 = vsyncpa [#allocation4], 0
    %s14 = scalar_lea.sflag [#allocation4], 1
    %15 = vsyncpa %s14, 0
    loop: start=0, step=1, limit=4
    $region2: #{tpu_custom_call.1} parent=1 // loop_pre_header
      _
    $region3: #{tpu_custom_call.1} parent=1 // loop_header
      %s17 = sphi 0, %s21
      %p18 = scmp.ge.s32.totalorder %s17, 4
      %s24 = sphi 0, %s36
      %s25 = sphi 0, %s32
      %s26 = sphi 0, %s24
      %s27 = sphi 0, %s25
      %s28 = sphi 0, %s26
      %s29 = sphi 0, %s27
      %s41 = sphi 0, %s43
      %s44 = sphi 0, %s41
      %s45 = sphi 0, %s44
      %s61 = sphi 0, %s45
      %s69 = sphi 0, %s71
      %s72 = sphi 0, %s69
      %s73 = sphi 0, %s72
      %s89 = sphi 0, %s73
      %s93 = sphi 0, %s93
      %s95 = sphi 0, %s93
      %s96 = sphi 0, %s95
      %s110 = sphi 0, %s96
      %s114 = sphi 0, %s114
      %s116 = sphi 0, %s114
      %s117 = sphi 0, %s116
      %s131 = sphi 0, %s117
      %s135 = sphi 0, %s135
      %s137 = sphi 0, %s135
      %s138 = sphi 0, %s137
      %s152 = sphi 0, %s138
      %s160 = sphi 0, %s162
      %s163 = sphi 0, %s160
      %s164 = sphi 0, %s163
      %s180 = sphi 0, %s164
    $region4: #{tpu_custom_call.1} parent=1 // loop_header_branch
      %20 = sbr.rel (%p18) target = $region8
    $region5: #{tpu_custom_call.1} parent=1 // loop_body
      %s22 = ssub.s32 %s17, 1
      %s23 = ssub.s32 %s17, 2
      %s30 = sadd.s32 1, %s25
      %p31 = scmp.ge.s32.totalorder %s30, 1
      %s32 = scalar_select %p31, 0, %s30
      %s33 = sadd.s32 1, %s24
      %s34 = scalar_select %p31, %s33, %s24
      %p35 = scmp.ge.s32.totalorder %s34, 2
      %s36 = scalar_select %p35, 0, %s34
      %s37 = ssub.s32 %s24, %s36
      %s38 = ssub.s32 %s25, %s32
      %s39 = sor.u32 %s37, %s38
      %p40 = scmp.eq.s32.totalorder %s39, 0
      %s42 = sadd.s32 %s41, 1
      %s43 = scalar_select %p40, %s41, %s42
      %p46 = pneg %p40
      %p47 = scmp.eq.s32.totalorder %s17, 1
      %p48 = por %p46, %p47
      %p49 = scmp.ne.s32.totalorder %s41, %s44
      %p50 = scmp.eq.s32.totalorder %s17, 0
      %p51 = por %p49, %p50
      %p52 = scmp.ne.s32.totalorder %s41, %s44
      %p53 = scmp.eq.s32.totalorder %s22, 1
      %p54 = por %p52, %p53
      %p55 = scmp.ne.s32.totalorder %s44, %s45
      %p56 = scmp.eq.s32.totalorder %s22, 0
      %p57 = por %p55, %p56
      %p58 = scmp.ne.s32.totalorder %s44, %s45
      %p59 = scmp.eq.s32.totalorder %s23, 1
      %p60 = por %p58, %p59
      %p62 = scmp.ne.s32.totalorder %s45, %s61
      %p63 = scmp.eq.s32.totalorder %s23, 0
      %p64 = por %p62, %p63
      %s65 = ssub.s32 %s24, %s36
      %s66 = ssub.s32 %s25, %s32
      %s67 = sor.u32 %s65, %s66
      %p68 = scmp.eq.s32.totalorder %s67, 0
      %s70 = sadd.s32 %s69, 1
      %s71 = scalar_select %p68, %s69, %s70
      %p74 = pneg %p68
      %p75 = scmp.eq.s32.totalorder %s17, 1
      %p76 = por %p74, %p75
      %p77 = scmp.ne.s32.totalorder %s69, %s72
      %p78 = scmp.eq.s32.totalorder %s17, 0
      %p79 = por %p77, %p78
      %p80 = scmp.ne.s32.totalorder %s69, %s72
      %p81 = scmp.eq.s32.totalorder %s22, 1
      %p82 = por %p80, %p81
      %p83 = scmp.ne.s32.totalorder %s72, %s73
      %p84 = scmp.eq.s32.totalorder %s22, 0
      %p85 = por %p83, %p84
      %p86 = scmp.ne.s32.totalorder %s72, %s73
      %p87 = scmp.eq.s32.totalorder %s23, 1
      %p88 = por %p86, %p87
      %p90 = scmp.ne.s32.totalorder %s73, %s89
      %p91 = scmp.eq.s32.totalorder %s23, 0
      %p92 = por %p90, %p91
      %s94 = sadd.s32 %s93, 1
      %p97 = scmp.eq.s32.totalorder %s17, 1
      %p98 = scmp.ne.s32.totalorder %s93, %s95
      %p99 = scmp.eq.s32.totalorder %s17, 0
      %p100 = por %p98, %p99
      %p101 = scmp.ne.s32.totalorder %s93, %s95
      %p102 = scmp.eq.s32.totalorder %s22, 1
      %p103 = por %p101, %p102
      %p104 = scmp.ne.s32.totalorder %s95, %s96
      %p105 = scmp.eq.s32.totalorder %s22, 0
      %p106 = por %p104, %p105
      %p107 = scmp.ne.s32.totalorder %s95, %s96
      %p108 = scmp.eq.s32.totalorder %s23, 1
      %p109 = por %p107, %p108
      %p111 = scmp.ne.s32.totalorder %s96, %s110
      %p112 = scmp.eq.s32.totalorder %s23, 0
      %p113 = por %p111, %p112
      %s115 = sadd.s32 %s114, 1
      %p118 = scmp.eq.s32.totalorder %s17, 1
      %p119 = scmp.ne.s32.totalorder %s114, %s116
      %p120 = scmp.eq.s32.totalorder %s17, 0
      %p121 = por %p119, %p120
      %p122 = scmp.ne.s32.totalorder %s114, %s116
      %p123 = scmp.eq.s32.totalorder %s22, 1
      %p124 = por %p122, %p123
      %p125 = scmp.ne.s32.totalorder %s116, %s117
      %p126 = scmp.eq.s32.totalorder %s22, 0
      %p127 = por %p125, %p126
      %p128 = scmp.ne.s32.totalorder %s116, %s117
      %p129 = scmp.eq.s32.totalorder %s23, 1
      %p130 = por %p128, %p129
      %p132 = scmp.ne.s32.totalorder %s117, %s131
      %p133 = scmp.eq.s32.totalorder %s23, 0
      %p134 = por %p132, %p133
      %s136 = sadd.s32 %s135, 1
      %p139 = scmp.eq.s32.totalorder %s17, 1
      %p140 = scmp.ne.s32.totalorder %s135, %s137
      %p141 = scmp.eq.s32.totalorder %s17, 0
      %p142 = por %p140, %p141
      %p143 = scmp.ne.s32.totalorder %s135, %s137
      %p144 = scmp.eq.s32.totalorder %s22, 1
      %p145 = por %p143, %p144
      %p146 = scmp.ne.s32.totalorder %s137, %s138
      %p147 = scmp.eq.s32.totalorder %s22, 0
      %p148 = por %p146, %p147
      %p149 = scmp.ne.s32.totalorder %s137, %s138
      %p150 = scmp.eq.s32.totalorder %s23, 1
      %p151 = por %p149, %p150
      %p153 = scmp.ne.s32.totalorder %s138, %s152
      %p154 = scmp.eq.s32.totalorder %s23, 0
      %p155 = por %p153, %p154
      %s156 = ssub.s32 %s24, %s36
      %s157 = ssub.s32 %s25, %s32
      %s158 = sor.u32 %s156, %s157
      %p159 = scmp.eq.s32.totalorder %s158, 0
      %s161 = sadd.s32 %s160, 1
      %s162 = scalar_select %p159, %s160, %s161
      %p165 = pneg %p159
      %p166 = scmp.eq.s32.totalorder %s17, 1
      %p167 = por %p165, %p166
      %p168 = scmp.ne.s32.totalorder %s160, %s163
      %p169 = scmp.eq.s32.totalorder %s17, 0
      %p170 = por %p168, %p169
      %p171 = scmp.ne.s32.totalorder %s160, %s163
      %p172 = scmp.eq.s32.totalorder %s22, 1
      %p173 = por %p171, %p172
      %p174 = scmp.ne.s32.totalorder %s163, %s164
      %p175 = scmp.eq.s32.totalorder %s22, 0
      %p176 = por %p174, %p175
      %p177 = scmp.ne.s32.totalorder %s163, %s164
      %p178 = scmp.eq.s32.totalorder %s23, 1
      %p179 = por %p177, %p178
      %p181 = scmp.ne.s32.totalorder %s164, %s180
      %p182 = scmp.eq.s32.totalorder %s23, 0
      %p183 = por %p181, %p182
      %p184 = scmp.le.s32.totalorder 1, %s17
      %p185 = scmp.lt.s32.totalorder %s17, 3
      %p186 = pnand %p184, %p185
      %p187 = pneg %p186
      // Predicated region
      $region9: #{tpu_custom_call.1} parent=5 // pred_check
        _
      $region10: #{tpu_custom_call.1} parent=5 // pred_check_branch
        %189 = sbr.rel (%p186) target = $region12
      $region11: #{tpu_custom_call.1} parent=5 // pred_region
        %s190 = ssub.s32 %s17, 1
        // Predicated region
        $region13: #{tpu_custom_call.1} parent=11 // pred_check
          %p191 = pneg %p106
        $region14: #{tpu_custom_call.1} parent=11 // pred_check_branch
          %193 = sbr.rel (%p191) target = $region16
        $region15: #{tpu_custom_call.1} parent=11 // pred_region
          _
        $region16: #{tpu_custom_call.1} parent=11 // pred_fallthru
          _
        // Predicated region
        $region17: #{tpu_custom_call.1} parent=11 // pred_check
          %p194 = pneg %p127
        $region18: #{tpu_custom_call.1} parent=11 // pred_check_branch
          %196 = sbr.rel (%p194) target = $region20
        $region19: #{tpu_custom_call.1} parent=11 // pred_region
          _
        $region20: #{tpu_custom_call.1} parent=11 // pred_fallthru
          _
        // Predicated region
        $region21: #{tpu_custom_call.1} parent=11 // pred_check
          %p197 = pneg %p148
        $region22: #{tpu_custom_call.1} parent=11 // pred_check_branch
          %199 = sbr.rel (%p197) target = $region24
        $region23: #{tpu_custom_call.1} parent=11 // pred_region
          _
        $region24: #{tpu_custom_call.1} parent=11 // pred_fallthru
          _
      $region12: #{tpu_custom_call.1} parent=5 // pred_fallthru
        _
      %p200 = scmp.lt.s32.totalorder %s17, 2
      // Predicated region
      $region25: #{tpu_custom_call.1} parent=5 // pred_check
        %p201 = pneg %p200
      $region26: #{tpu_custom_call.1} parent=5 // pred_check_branch
        %203 = sbr.rel (%p201) target = $region28
      $region27: #{tpu_custom_call.1} parent=5 // pred_region
        // Predicated region
        $region29: #{tpu_custom_call.1} parent=27 // pred_check
          %p204 = pneg %p51
        $region30: #{tpu_custom_call.1} parent=27 // pred_check_branch
          %206 = sbr.rel (%p204) target = $region32
        $region31: #{tpu_custom_call.1} parent=27 // pred_region
          %s207 = smul.u32 2, %s25
          %p208 = scmp.lt.s32.totalorder %s24, 1
          %s209 = scalar_select %p208, %s24, 1
          %p210 = scmp.lt.s32.totalorder %s207, 1
          %s211 = scalar_select %p210, %s207, 1
          %s212 = smul.addr %s209, 2
          %s213 = sadd.s32 %s211, %s212
          %s214 = smul.addr %s213, 4
          %s215 = scalar_lea.vmem %s0, %s214
          %s216 = smul.u32 2, %s25
        $region32: #{tpu_custom_call.1} parent=27 // pred_fallthru
          _
        // Predicated region
        $region33: #{tpu_custom_call.1} parent=27 // pred_check
          %p217 = pneg %p79
        $region34: #{tpu_custom_call.1} parent=27 // pred_check_branch
          %219 = sbr.rel (%p217) target = $region36
        $region35: #{tpu_custom_call.1} parent=27 // pred_region
          %s220 = sand.u32 %s69, 1
          %s221 = scalar_lea.sflag [#allocation3], %s220
          %s222 = sand.u32 %s69, 1
          %s223 = smul.addr %s222, 64
          %s224 = scalar_lea.vmem [#allocation2], %s223
          %s225 = smul.u32 2, %s25
          %227 = vsyncadd %s221, 0
          %s228 = smul.addr %s24, 8
          %s229 = sadd.s32 %s225, %s228
          %s230 = smul.addr %s229, 8
          %s231 = scalar_lea.hbm %s1, %s230
          %s232 = sshll.u32 %s231, 4
          %s233 = int_to_ptr.hbm [resolvable:$true] %s232
          %s234 = sshll.u32 %s224, 4
          %s235 = int_to_ptr.vmem [resolvable:$true] %s234
          %240 = dma.hbm_to_vmem [thread:$0]  %s233, 1024, %s235, %s221, 256, 256, 16
        $region36: #{tpu_custom_call.1} parent=27 // pred_fallthru
          _
      $region28: #{tpu_custom_call.1} parent=5 // pred_fallthru
        _
      %p241 = scmp.le.s32.totalorder 1, %s17
      %p242 = scmp.lt.s32.totalorder %s17, 3
      %p243 = pnand %p241, %p242
      %p244 = pneg %p243
      // Predicated region
      $region37: #{tpu_custom_call.1} parent=5 // pred_check
        _
      $region38: #{tpu_custom_call.1} parent=5 // pred_check_branch
        %246 = sbr.rel (%p243) target = $region40
      $region39: #{tpu_custom_call.1} parent=5 // pred_region
        %s247 = ssub.s32 %s17, 1
        %s248 = sand.u32 %s72, 1
        %s249 = scalar_lea.sflag [#allocation3], %s248
        %s250 = sand.u32 %s72, 1
        %s251 = smul.addr %s250, 64
        %s252 = scalar_lea.vmem [#allocation2], %s251
        // Predicated region
        $region41: #{tpu_custom_call.1} parent=39 // pred_check
          %p253 = pneg %p85
        $region42: #{tpu_custom_call.1} parent=39 // pred_check_branch
          %255 = sbr.rel (%p253) target = $region44
        $region43: #{tpu_custom_call.1} parent=39 // pred_region
          %257 = dma.done %s249, 1024
        $region44: #{tpu_custom_call.1} parent=39 // pred_fallthru
          _
        %s258 = smul.u32 2, %s27
        %p259 = scmp.lt.s32.totalorder %s26, 1
        %s260 = scalar_select %p259, %s26, 1
        %p261 = scmp.lt.s32.totalorder %s258, 1
        %s262 = scalar_select %p261, %s258, 1
        %s263 = smul.addr %s260, 2
        %s264 = sadd.s32 %s262, %s263
        %s265 = smul.addr %s264, 4
        %s266 = scalar_lea.vmem %s0, %s265
        %p267 = pneg %p57
        %p268 = pneg %p54
        %s269 = sand.u32 %s72, 1
        %s270 = scalar_lea.sflag [#allocation3], %s269
        %s271 = sand.u32 %s72, 1
        %s272 = smul.addr %s271, 64
        %s273 = scalar_lea.vmem [#allocation2], %s272
        %p274 = pneg %p85
        %p275 = pneg %p82
        %p276 = pneg %p106
        %p277 = pneg %p103
        %p278 = pneg %p127
        %p279 = pneg %p124
        %p280 = pneg %p148
        %p281 = pneg %p145
        %p282 = pneg %p176
        %p283 = pneg %p173
        %s284 = sand.u32 %s163, 1
        %s285 = scalar_lea.sflag [#allocation4], %s284
        %s286 = sand.u32 %s163, 1
        %s287 = smul.addr %s286, 64
        %s288 = scalar_lea.vmem [#allocation5], %s287
        %s289 = smul.u32 2, %s27
        %p290 = scmp.lt.s32.totalorder %s26, 1
        %s291 = scalar_select %p290, %s26, 1
        %p292 = scmp.lt.s32.totalorder %s289, 1
        %s293 = scalar_select %p292, %s289, 1
        %s294 = smul.addr %s291, 2
        %s295 = sadd.s32 %s293, %s294
        %s296 = smul.addr %s295, 4
        %s297 = scalar_lea.vmem %s0, %s296
        %s298 = smul.u32 2, %s27
        %s299 = smul.u32 2, %s27
        %s300 = smul.u32 2, %s27
        %v301 = vld [vmem:[%s3] sm:$0xff]
        %v302 = vld [vmem:[%s3 + $0x8] sm:$0xff]
        %v303 = vld [vmem:[%s3 + $0x10] sm:$0xff]
        %v304 = vld [vmem:[%s3 + $0x18] sm:$0xff]
        %v305 = vld [vmem:[%s252] sm:$0xff]
        %v306 = vld [vmem:[%s252 + $0x8] sm:$0xff]
        %v307 = vld [vmem:[%s252 + $0x10] sm:$0xff]
        %v308 = vld [vmem:[%s252 + $0x18] sm:$0xff]
        %v309 = vld [vmem:[%s252 + $0x20] sm:$0xff]
        %v310 = vld [vmem:[%s252 + $0x28] sm:$0xff]
        %v311 = vld [vmem:[%s252 + $0x30] sm:$0xff]
        %v312 = vld [vmem:[%s252 + $0x38] sm:$0xff]
        %v313 = vld [vmem:[%s2] sm:$0xff]
        %v314 = vld [vmem:[%s2 + $0x8] sm:$0xff]
        %v315 = vld [vmem:[%s2 + $0x10] sm:$0xff]
        %v316 = vld [vmem:[%s2 + $0x18] sm:$0xff]
        %v317 = vld [vmem:[%s297] sm:$0xff]
        %319 = vst [vmem:[#allocation1] ss:$2 sm:$0xff] %v317
        %v320 = vld.sshfl [vmem:[#allocation1] sm:$0xff pattern:$0x75316420]
        %v321 = vld.sshfl [vmem:[#allocation1 + $0x8] sm:$0xff pattern:$0x75316420]
        %vm322 = vcmask 31744
        %v324 = vsel %vm322, %v313, 0
        %v327 = vsel %vm322, %v314, 0
        %v330 = vsel %vm322, %v315, 0
        %v333 = vsel %vm322, %v316, 0
        %vm335 = vcmask 1043456
        %v336 = vsel %vm335, %v320, 0
        %v338 = vsel %vm335, %v321, 0
        %340 = vmatpush.msra.mxu0 0.0
        %341 = vmatpush.msra.mxu0 0.0
        %342 = vmatpush.msra.mxu0 0.0
        %343 = vmatpush.msra.mxu0 0.0
        %344 = vmatpush.msra.mxu0 0.0
        %345 = vmatpush.msra.mxu0 0.0
        %346 = vmatpush.msra.mxu0 0.0
        %347 = vmatpush.msra.mxu0 0.0
        %348 = vmatpush.msra.mxu0 0.0
        %349 = vmatpush.msra.mxu0 0.0
        %350 = vmatpush.msra.mxu0 0.0
        %351 = vmatpush.msra.mxu0 0.0
        %352 = vmatpush.msra.mxu0 0.0
        %353 = vmatpush.msra.mxu0 0.0
        %354 = vmatpush.msra.mxu0 0.0
        %355 = vmatpush.msra.mxu0 %v336
        %356 = vmatmul.f32.gmra.mxu0 %v324
        %v357 = vpop.f32.mrf.mxu0
        %v358 = vadd.f32 0.0, %v357
        %359 = vmatmul.f32.gmra.mxu0 %v327
        %v360 = vpop.f32.mrf.mxu0
        %v361 = vadd.f32 0.0, %v360
        %362 = vmatmul.f32.gmra.mxu0 %v330
        %v363 = vpop.f32.mrf.mxu0
        %v364 = vadd.f32 0.0, %v363
        %365 = vmatmul.f32.gmra.mxu0 %v333
        %v366 = vpop.f32.mrf.mxu0
        %v367 = vadd.f32 0.0, %v366
        %368 = vdwg.mxu0
        %369 = vmatpush.msra.mxu0 0.0
        %370 = vmatpush.msra.mxu0 0.0
        %371 = vmatpush.msra.mxu0 0.0
        %372 = vmatpush.msra.mxu0 0.0
        %373 = vmatpush.msra.mxu0 0.0
        %374 = vmatpush.msra.mxu0 0.0
        %375 = vmatpush.msra.mxu0 0.0
        %376 = vmatpush.msra.mxu0 0.0
        %377 = vmatpush.msra.mxu0 0.0
        %378 = vmatpush.msra.mxu0 0.0
        %379 = vmatpush.msra.mxu0 0.0
        %380 = vmatpush.msra.mxu0 0.0
        %381 = vmatpush.msra.mxu0 0.0
        %382 = vmatpush.msra.mxu0 0.0
        %383 = vmatpush.msra.mxu0 0.0
        %384 = vmatpush.msra.mxu0 %v338
        %385 = vmatmul.f32.gmra.mxu0 %v324
        %v386 = vpop.f32.mrf.mxu0
        %v387 = vadd.f32 0.0, %v386
        %388 = vmatmul.f32.gmra.mxu0 %v327
        %v389 = vpop.f32.mrf.mxu0
        %v390 = vadd.f32 0.0, %v389
        %391 = vmatmul.f32.gmra.mxu0 %v330
        %v392 = vpop.f32.mrf.mxu0
        %v393 = vadd.f32 0.0, %v392
        %394 = vmatmul.f32.gmra.mxu0 %v333
        %v395 = vpop.f32.mrf.mxu0
        %v396 = vadd.f32 0.0, %v395
        %397 = vdwg.mxu0
        %vm398 = vcmask 261120
        %v400 = vsel %vm398, %v301, 0
        %v403 = vsel %vm398, %v302, 0
        %v406 = vsel %vm398, %v303, 0
        %v409 = vsel %vm398, %v304, 0
        %411 = vmatpush.msra.mxu0 0.0
        %412 = vmatpush.msra.mxu0 0.0
        %413 = vmatpush.msra.mxu0 0.0
        %414 = vmatpush.msra.mxu0 0.0
        %415 = vmatpush.msra.mxu0 0.0
        %416 = vmatpush.msra.mxu0 0.0
        %417 = vmatpush.msra.mxu0 0.0
        %418 = vmatpush.msra.mxu0 0.0
        %419 = vmatpush.msra.mxu0 0.0
        %420 = vmatpush.msra.mxu0 0.0
        %421 = vmatpush.msra.mxu0 0.0
        %422 = vmatpush.msra.mxu0 0.0
        %423 = vmatpush.msra.mxu0 %v311
        %424 = vmatpush.msra.mxu0 %v309
        %425 = vmatpush.msra.mxu0 %v307
        %426 = vmatpush.msra.mxu0 %v305
        %427 = vmatmul.f32.gmra.mxu0 %v400
        %v428 = vpop.f32.mrf.mxu0
        %v429 = vadd.f32 %v358, %v428
        %430 = vmatmul.f32.gmra.mxu0 %v403
        %v431 = vpop.f32.mrf.mxu0
        %v432 = vadd.f32 %v361, %v431
        %433 = vmatmul.f32.gmra.mxu0 %v406
        %v434 = vpop.f32.mrf.mxu0
        %v435 = vadd.f32 %v364, %v434
        %436 = vmatmul.f32.gmra.mxu0 %v409
        %v437 = vpop.f32.mrf.mxu0
        %v438 = vadd.f32 %v367, %v437
        %439 = vdwg.mxu0
        %440 = vmatpush.msra.mxu0 0.0
        %441 = vmatpush.msra.mxu0 0.0
        %442 = vmatpush.msra.mxu0 0.0
        %443 = vmatpush.msra.mxu0 0.0
        %444 = vmatpush.msra.mxu0 0.0
        %445 = vmatpush.msra.mxu0 0.0
        %446 = vmatpush.msra.mxu0 0.0
        %447 = vmatpush.msra.mxu0 0.0
        %448 = vmatpush.msra.mxu0 0.0
        %449 = vmatpush.msra.mxu0 0.0
        %450 = vmatpush.msra.mxu0 0.0
        %451 = vmatpush.msra.mxu0 0.0
        %452 = vmatpush.msra.mxu0 %v312
        %453 = vmatpush.msra.mxu0 %v310
        %454 = vmatpush.msra.mxu0 %v308
        %455 = vmatpush.msra.mxu0 %v306
        %456 = vmatmul.f32.gmra.mxu0 %v400
        %v457 = vpop.f32.mrf.mxu0
        %v458 = vadd.f32 %v387, %v457
        %459 = vmatmul.f32.gmra.mxu0 %v403
        %v460 = vpop.f32.mrf.mxu0
        %v461 = vadd.f32 %v390, %v460
        %462 = vmatmul.f32.gmra.mxu0 %v406
        %v463 = vpop.f32.mrf.mxu0
        %v464 = vadd.f32 %v393, %v463
        %465 = vmatmul.f32.gmra.mxu0 %v409
        %v466 = vpop.f32.mrf.mxu0
        %v467 = vadd.f32 %v396, %v466
        %468 = vdwg.mxu0
        %v469 = vld [vmem:[%s4] sm:$0xff]
        %v470 = vld [vmem:[%s4 + $0x8] sm:$0xff]
        %v471 = vld [vmem:[%s4 + $0x10] sm:$0xff]
        %v472 = vld [vmem:[%s4 + $0x18] sm:$0xff]
        %474 = vset.pattern.permute.xlu0 0
        %475 = vperm.xlu0 %474, %v469
        %v476 = vpop.permute.xlu0 %475
        %479 = vset.pattern.permute.xlu0 0
        %480 = vperm.xlu0 %479, %v470
        %v481 = vpop.permute.xlu0 %480
        %484 = vset.pattern.permute.xlu0 0
        %485 = vperm.xlu0 %484, %v471
        %v486 = vpop.permute.xlu0 %485
        %489 = vset.pattern.permute.xlu0 0
        %490 = vperm.xlu0 %489, %v472
        %v491 = vpop.permute.xlu0 %490
        %v493 = vadd.f32 %v429, %v476
        %v494 = vadd.f32 %v458, %v476
        %v495 = vadd.f32 %v432, %v481
        %v496 = vadd.f32 %v461, %v481
        %v497 = vadd.f32 %v435, %v486
        %v498 = vadd.f32 %v464, %v486
        %v499 = vadd.f32 %v438, %v491
        %v500 = vadd.f32 %v467, %v491
        %vm501 = vcmp.gt.f32.partialorder %v493, 0.0
        %vm502 = vcmp.gt.f32.partialorder %v494, 0.0
        %vm503 = vcmp.gt.f32.partialorder %v495, 0.0
        %vm504 = vcmp.gt.f32.partialorder %v496, 0.0
        %vm505 = vcmp.gt.f32.partialorder %v497, 0.0
        %vm506 = vcmp.gt.f32.partialorder %v498, 0.0
        %vm507 = vcmp.gt.f32.partialorder %v499, 0.0
        %vm508 = vcmp.gt.f32.partialorder %v500, 0.0
        %v509 = vmul.f32 %v493, 0.01
        %v510 = vmul.f32 %v494, 0.01
        %v511 = vmul.f32 %v495, 0.01
        %v512 = vmul.f32 %v496, 0.01
        %v513 = vmul.f32 %v497, 0.01
        %v514 = vmul.f32 %v498, 0.01
        %v515 = vmul.f32 %v499, 0.01
        %v516 = vmul.f32 %v500, 0.01
        %v517 = vsel %vm501, %v493, %v509
        %v518 = vsel %vm502, %v494, %v510
        %v519 = vsel %vm503, %v495, %v511
        %v520 = vsel %vm504, %v496, %v512
        %v521 = vsel %vm505, %v497, %v513
        %v522 = vsel %vm506, %v498, %v514
        %v523 = vsel %vm507, %v499, %v515
        %v524 = vsel %vm508, %v500, %v516
        %v525 = vadd.f32 %v517, %v519
        %v526 = vadd.f32 %v525, %v521
        %v527 = vadd.f32 %v526, %v523
        %v528 = vrot.slane %v527, 4
        %v529 = vadd.f32 %v527, %v528
        %v530 = vrot.slane %v529, 2
        %v531 = vadd.f32 %v529, %v530
        %v532 = vrot.slane %v531, 1
        %v533 = vadd.f32 %v531, %v532
        %v534 = vadd.f32 %v518, %v520
        %v535 = vadd.f32 %v534, %v522
        %v536 = vadd.f32 %v535, %v524
        %v537 = vrot.slane %v536, 4
        %v538 = vadd.f32 %v536, %v537
        %v539 = vrot.slane %v538, 2
        %v540 = vadd.f32 %v538, %v539
        %v541 = vrot.slane %v540, 1
        %v542 = vadd.f32 %v540, %v541
        %v543 = vrcp.pop 32.0
        %v544 = vmul.f32 32.0, %v543
        %v545 = vsub.f32 1.0, %v544
        %v546 = vmul.f32 %v543, %v545
        %v547 = vadd.f32 %v543, %v546
        %vm548 = vweird.f32 %v543
        %v549 = vsel %vm548, %v543, %v547
        %v550 = vmul.f32 %v533, %v549
        %v551 = vmul.f32 %v542, %v549
        %v552 = vsub.f32 %v517, %v550
        %v553 = vsub.f32 %v518, %v551
        %v554 = vsub.f32 %v519, %v550
        %v555 = vsub.f32 %v520, %v551
        %v556 = vsub.f32 %v521, %v550
        %v557 = vsub.f32 %v522, %v551
        %v558 = vsub.f32 %v523, %v550
        %v559 = vsub.f32 %v524, %v551
        %v560 = vmul.f32 %v552, %v552
        %v561 = vmul.f32 %v553, %v553
        %v562 = vmul.f32 %v554, %v554
        %v563 = vmul.f32 %v555, %v555
        %v564 = vmul.f32 %v556, %v556
        %v565 = vmul.f32 %v557, %v557
        %v566 = vmul.f32 %v558, %v558
        %v567 = vmul.f32 %v559, %v559
        %v568 = vadd.f32 %v560, %v562
        %v569 = vadd.f32 %v568, %v564
        %v570 = vadd.f32 %v569, %v566
        %v571 = vrot.slane %v570, 4
        %v572 = vadd.f32 %v570, %v571
        %v573 = vrot.slane %v572, 2
        %v574 = vadd.f32 %v572, %v573
        %v575 = vrot.slane %v574, 1
        %v576 = vadd.f32 %v574, %v575
        %v577 = vadd.f32 %v561, %v563
        %v578 = vadd.f32 %v577, %v565
        %v579 = vadd.f32 %v578, %v567
        %v580 = vrot.slane %v579, 4
        %v581 = vadd.f32 %v579, %v580
        %v582 = vrot.slane %v581, 2
        %v583 = vadd.f32 %v581, %v582
        %v584 = vrot.slane %v583, 1
        %v585 = vadd.f32 %v583, %v584
        %v586 = vmul.f32 %v576, %v549
        %v587 = vmul.f32 %v585, %v549
        %v588 = vadd.f32 %v586, 1e-05
        %v589 = vadd.f32 %v587, 1e-05
        %v590 = vrsqrt.pop %v588
        %v591 = vmul.f32 %v590, %v588
        %v592 = vmul.f32 %v591, %v590
        %v593 = vmul.f32 0.5, %v592
        %v594 = vsub.f32 1.5, %v593
        %v595 = vmul.f32 %v590, %v594
        %vm596 = vweird.f32 %v588
        %vm597 = vweird.f32 %v590
        %vm598 = vmor %vm596, %vm597
        %v599 = vsel %vm598, %v590, %v595
        %v600 = vrsqrt.pop %v589
        %v601 = vmul.f32 %v600, %v589
        %v602 = vmul.f32 %v601, %v600
        %v603 = vmul.f32 0.5, %v602
        %v604 = vsub.f32 1.5, %v603
        %v605 = vmul.f32 %v600, %v604
        %vm606 = vweird.f32 %v589
        %vm607 = vweird.f32 %v600
        %vm608 = vmor %vm606, %vm607
        %v609 = vsel %vm608, %v600, %v605
        %v610 = vmul.f32 %v552, %v599
        %v611 = vmul.f32 %v553, %v609
        %v612 = vmul.f32 %v554, %v599
        %v613 = vmul.f32 %v555, %v609
        %v614 = vmul.f32 %v556, %v599
        %v615 = vmul.f32 %v557, %v609
        %v616 = vmul.f32 %v558, %v599
        %v617 = vmul.f32 %v559, %v609
        %618 = vset.pattern.permute.xlu0 1
        %619 = vperm.xlu0 %618, %v469
        %v620 = vpop.permute.xlu0 %619
        %622 = vset.pattern.permute.xlu0 1
        %623 = vperm.xlu0 %622, %v470
        %v624 = vpop.permute.xlu0 %623
        %626 = vset.pattern.permute.xlu0 1
        %627 = vperm.xlu0 %626, %v471
        %v628 = vpop.permute.xlu0 %627
        %630 = vset.pattern.permute.xlu0 1
        %631 = vperm.xlu0 %630, %v472
        %v632 = vpop.permute.xlu0 %631
        %v634 = vmul.f32 %v610, %v620
        %v635 = vmul.f32 %v611, %v620
        %v636 = vmul.f32 %v612, %v624
        %v637 = vmul.f32 %v613, %v624
        %v638 = vmul.f32 %v614, %v628
        %v639 = vmul.f32 %v615, %v628
        %v640 = vmul.f32 %v616, %v632
        %v641 = vmul.f32 %v617, %v632
        %642 = vset.pattern.permute.xlu0 2
        %643 = vperm.xlu0 %642, %v469
        %v644 = vpop.permute.xlu0 %643
        %646 = vset.pattern.permute.xlu0 2
        %647 = vperm.xlu0 %646, %v470
        %v648 = vpop.permute.xlu0 %647
        %650 = vset.pattern.permute.xlu0 2
        %651 = vperm.xlu0 %650, %v471
        %v652 = vpop.permute.xlu0 %651
        %654 = vset.pattern.permute.xlu0 2
        %655 = vperm.xlu0 %654, %v472
        %v656 = vpop.permute.xlu0 %655
        %v658 = vadd.f32 %v634, %v644
        %v659 = vadd.f32 %v635, %v644
        %v660 = vadd.f32 %v636, %v648
        %v661 = vadd.f32 %v637, %v648
        %v662 = vadd.f32 %v638, %v652
        %v663 = vadd.f32 %v639, %v652
        %v664 = vadd.f32 %v640, %v656
        %v665 = vadd.f32 %v641, %v656
        %666 = vst [vmem:[%s288] sm:$0xff] %v658
        %667 = vst [vmem:[%s288 + $0x8] sm:$0xff] %v659
        %668 = vst [vmem:[%s288 + $0x10] sm:$0xff] %v660
        %669 = vst [vmem:[%s288 + $0x18] sm:$0xff] %v661
        %670 = vst [vmem:[%s288 + $0x20] sm:$0xff] %v662
        %671 = vst [vmem:[%s288 + $0x28] sm:$0xff] %v663
        %672 = vst [vmem:[%s288 + $0x30] sm:$0xff] %v664
        %673 = vst [vmem:[%s288 + $0x38] sm:$0xff] %v665
        %s674 = sand.u32 %s163, 1
        %s675 = scalar_lea.sflag [#allocation4], %s674
        %s676 = sand.u32 %s163, 1
        %s677 = smul.addr %s676, 64
        %s678 = scalar_lea.vmem [#allocation5], %s677
        // Predicated region
        $region45: #{tpu_custom_call.1} parent=39 // pred_check
          %p679 = pneg %p173
        $region46: #{tpu_custom_call.1} parent=39 // pred_check_branch
          %681 = sbr.rel (%p679) target = $region48
        $region47: #{tpu_custom_call.1} parent=39 // pred_region
          %s682 = smul.u32 2, %s27
          %684 = vsyncadd %s675, 0
          %s685 = smul.addr %s26, 8
          %s686 = sadd.s32 %s682, %s685
          %s687 = smul.addr %s686, 8
          %s688 = scalar_lea.hbm %s5, %s687
          %s689 = sshll.u32 %s678, 4
          %s690 = int_to_ptr.vmem [resolvable:$true] %s689
          %s691 = sshll.u32 %s688, 4
          %s692 = int_to_ptr.hbm [resolvable:$true] %s691
          %697 = dma.vmem_to_hbm [thread:$0]  %s690, 1024, %s692, %s675, 256, 256, 16
        $region48: #{tpu_custom_call.1} parent=39 // pred_fallthru
          _
      $region40: #{tpu_custom_call.1} parent=5 // pred_fallthru
        _
      %p698 = scmp.le.s32.totalorder 2, %s17
      // Predicated region
      $region49: #{tpu_custom_call.1} parent=5 // pred_check
        %p699 = pneg %p698
      $region50: #{tpu_custom_call.1} parent=5 // pred_check_branch
        %701 = sbr.rel (%p699) target = $region52
      $region51: #{tpu_custom_call.1} parent=5 // pred_region
        %s702 = ssub.s32 %s17, 2
        // Predicated region
        $region53: #{tpu_custom_call.1} parent=51 // pred_check
          %p703 = pneg %p179
        $region54: #{tpu_custom_call.1} parent=51 // pred_check_branch
          %705 = sbr.rel (%p703) target = $region56
        $region55: #{tpu_custom_call.1} parent=51 // pred_region
          %s706 = sand.u32 %s164, 1
          %s707 = scalar_lea.sflag [#allocation4], %s706
          %s708 = sand.u32 %s164, 1
          %s709 = smul.addr %s708, 64
          %s710 = scalar_lea.vmem [#allocation5], %s709
          %712 = dma.done %s707, 1024
        $region56: #{tpu_custom_call.1} parent=51 // pred_fallthru
          _
      $region52: #{tpu_custom_call.1} parent=5 // pred_fallthru
        _
    $region6: #{tpu_custom_call.1} parent=1 // loop_footer
      %s21 = sadd.s32 1, %s17
    $region7: #{tpu_custom_call.1} parent=1 // loop_footer_branch
      %16 = sbr.rel target = $region3
    $region8: #{tpu_custom_call.1} parent=1 // loop_exit
      _
    %713 = vsyncpa [#allocation3], 1
    %s714 = scalar_lea.sflag [#allocation3], 1
    %715 = vsyncpa %s714, 1
    %716 = vsyncpa [#allocation4], 1
    %s717 = scalar_lea.sflag [#allocation4], 1
    %718 = vsyncpa %s717, 1

</llo_original>
